<compile_context>
chip_gen: v7x
topology: tpu7x:2x2x1
jax: 0.10.0
libtpu: 0.0.40
codegen_flags: <defaults>
</compile_context>

<pallas_src>
import jax
import jax.numpy as jnp
from jax.experimental import pallas as pl
from jax.experimental.pallas import tpu as pltpu


# ----------------------------------------------------------------------------
# Pallas kernel: hybrid (MLP) path for one batch tile. CF path lives in XLA.
# ----------------------------------------------------------------------------
def _hybrid_kernel(
    ue_ie_ref,   # (TB, 2D)  bf16  concat([user_emb, item_emb], -1)
    img_ref,     # (TB, F)   bf16  image features
    wcf_ref,     # (2D, H)   bf16  cf_projection weight (user/item halves stacked)
    wi1_ref,     # (F, H)    bf16  image_projection[0] weight
    w4_ref,      # (4, H, H) bf16  [w_img2, w_f1 cf-half, w_f1 content-half, w_f2 zero-padded]
    brows_ref,   # (8, H)    f32   [b_cf, b_img1, b_img2, b_f1, bn_scale, bn_shift, b_f2 pad, w_f3 row pad]
    out_ref,     # (TB, 1)   f32   hybrid prediction (pre-b_f3)
):
    f32 = jnp.float32
    bf16 = jnp.bfloat16

    # --- cf_projection on concat([user_emb, item_emb]): one K=2D MXU dot ----
    cf_proj = (
        jnp.dot(ue_ie_ref[...], wcf_ref[...], preferred_element_type=f32)
        + brows_ref[0:1, :]
    )

    # --- image_projection: Linear -> ReLU -> (Dropout=id) -> Linear ---------
    h = jnp.dot(img_ref[...], wi1_ref[...], preferred_element_type=f32)
    h = jnp.maximum(h + brows_ref[1:2, :], 0.0)
    content = (
        jnp.dot(h.astype(bf16), w4_ref[0], preferred_element_type=f32)
        + brows_ref[2:3, :]
    )

    # --- fusion[0]: Linear(2H -> H) on concat([cf_proj, content]) -----------
    # TODO(synk): when hidden_dim % 128 == 0 the two dots can be merged into a
    # single K=2H dot by lane-concatenating cf_proj/content (v6e MXU underfill).
    f = (
        jnp.dot(cf_proj.astype(bf16), w4_ref[1], preferred_element_type=f32)
        + jnp.dot(content.astype(bf16), w4_ref[2], preferred_element_type=f32)
        + brows_ref[3:4, :]
    )
    f = jnp.maximum(f, 0.0)                          # ReLU (Dropout = identity)
    f = f * brows_ref[4:5, :] + brows_ref[5:6, :]    # BatchNorm1d eval, folded affine

    # --- fusion[4]: Linear(H -> H/2), zero-padded out to width H -------------
    g = jnp.dot(f.astype(bf16), w4_ref[3], preferred_element_type=f32) + brows_ref[6:7, :]
    g = jnp.maximum(g, 0.0)                          # padded columns stay exactly 0

    # --- fusion[7]: Linear(H/2 -> 1) as VPU mul + cross-lane reduce ----------
    out_ref[...] = jnp.sum(g * brows_ref[7:8, :], axis=1, keepdims=True)


# ----------------------------------------------------------------------------
# Wrapper: gathers + CF path + operand packing in XLA, hot path in Pallas.
# ----------------------------------------------------------------------------
def hybrid_forward(params, user_ids, item_ids, image_features, *, batch_tile=512):
    f32, bf16 = jnp.float32, jnp.bfloat16

    # TODO(synk): embedding gather could move in-kernel (scalar-prefetch ids +
    # data-dependent index_map / manual DMA) to avoid materializing gathered
    # rows in HBM; kept in XLA because 2D-float rows make per-row DMAs
    # descriptor-heavy. allow_input_fusion is another option to evaluate.
    user_emb = jnp.take(params["user_embedding"], user_ids, axis=0).astype(f32)
    item_emb = jnp.take(params["item_embedding"], item_ids, axis=0).astype(f32)

    # CF prediction stays f32 in the wrapper (fuses with the gathers, keeps the
    # tight tolerance on cf_prediction).
    cf_pred = (
        jnp.sum(user_emb * item_emb, axis=1)
        + jnp.take(params["user_bias"], user_ids, axis=0)[:, 0]
        + jnp.take(params["item_bias"], item_ids, axis=0)[:, 0]
        + params["global_bias"][0]
    ).astype(f32)                                                    # (B,)

    B, D = user_emb.shape
    F = image_features.shape[1]
    H = params["b_cf"].shape[-1]
    H2 = params["w_f3"].shape[0]

    # Fold BatchNorm1d (eval-mode) running stats into scale/shift.
    eps = 1e-5
    bn_scale = params["bn_gamma"] / jnp.sqrt(params["bn_var"] + eps)
    bn_shift = params["bn_beta"] - params["bn_mean"] * bn_scale

    def _row(v):
        v = v.reshape(-1).astype(f32)
        return jnp.pad(v, (0, H - v.shape[0]))

    brows = jnp.stack([
        _row(params["b_cf"]), _row(params["b_img1"]), _row(params["b_img2"]),
        _row(params["b_f1"]), _row(bn_scale), _row(bn_shift),
        _row(params["b_f2"]), _row(params["w_f3"][:, 0]),
    ])                                                               # (8, H) f32

    wcf = jnp.concatenate(
        [params["w_cf_u"], params["w_cf_i"]], axis=0).astype(bf16)   # (2D, H)
    w_img1 = params["w_img1"].astype(bf16)                           # (F, H)
    w4 = jnp.stack([
        params["w_img2"],
        params["w_f1_a"],
        params["w_f1_b"],
        jnp.pad(params["w_f2"], ((0, 0), (0, H - H2))),
    ]).astype(bf16)                                                  # (4, H, H)

    # --- batch tiling: multiple of 8, <= batch_tile, always >= 2 grid steps
    # so both v7x TensorCores get work (harmless extra step on v5e/v6e).
    def _ru(x, m):
        return -(-x // m) * m

    b8 = _ru(B, 8)
    tb = min(batch_tile, max(8, _ru(-(-b8 // 2), 8)))
    b_pad = max(_ru(b8, tb), 2 * tb)

    def _pad_rows(x):
        return jnp.pad(x, ((0, b_pad - B), (0, 0)))

    ue_ie = _pad_rows(jnp.concatenate([user_emb, item_emb], axis=1).astype(bf16))
    img = _pad_rows(image_features.astype(bf16))

    def act(cols):                       # per-tile activation spec (double-buffered)
        return pl.BlockSpec((tb, cols), lambda i: (i, 0))

    def resident(shape):                 # VMEM-resident weights, single-buffered
        n = len(shape)
        return pl.BlockSpec(shape, lambda i: (0,) * n, pipeline_mode=pl.Buffered(1))

    flops = 2 * b_pad * (2 * D * H + F * H + 4 * H * H + H)
    bytes_accessed = int(
        ue_ie.size * 2 + img.size * 2 + b_pad * 4          # activations in/out
        + (wcf.size + w_img1.size + w4.size) * 2 + brows.size * 4   # weights
    )
    cost = pl.CostEstimate(flops=flops, transcendentals=0,
                           bytes_accessed=bytes_accessed)

    hyb_raw = pl.pallas_call(
        _hybrid_kernel,
        grid=(b_pad // tb,),
        in_specs=[
            act(2 * D),                                      # concat embeddings (bf16)
            act(F),                                          # image features (bf16)
            resident((2 * D, H)),                            # cf_projection weight
            resident((F, H)),                                # image_projection[0]
            resident((4, H, H)),                             # HxH weight stack
            resident((8, H)),                                # bias / BN / w_f3 rows
        ],
        out_specs=pl.BlockSpec((tb, 1), lambda i: (i, 0)),
        out_shape=jax.ShapeDtypeStruct((b_pad, 1), f32),
        compiler_params=pltpu.CompilerParams(
            dimension_semantics=("parallel",),
            vmem_limit_bytes=48 * 1024 * 1024,
        ),
        cost_estimate=cost,
    )(ue_ie, img, wcf, w_img1, w4, brows)

    hyb = hyb_raw[:B, 0] + params["b_f3"].reshape(()).astype(f32)
    alpha = jax.nn.sigmoid(params["alpha_raw"]).astype(f32)
    pred = alpha * cf_pred + (1.0 - alpha) * hyb
    return {
        "prediction": pred,              # torch .squeeze()
        "cf_prediction": cf_pred,
        "hybrid_prediction": hyb,
        "alpha": alpha,
    }


# ----------------------------------------------------------------------------
# Deterministic parameter construction (mirrors HybridRecommender.__init__).
# ----------------------------------------------------------------------------
def init_params(key, num_users, num_items, cf_dim, image_dim, hidden_dim):
    f32 = jnp.float32
    ks = jax.random.split(key, 16)
    H, H2 = hidden_dim, hidden_dim // 2

    def lin(k, fan_in, fan_out):
        # deterministic stand-in for nn.Linear init; stored as (in, out)
        bound = 1.0 / jnp.sqrt(fan_in)
        kw, kb = jax.random.split(k)
        w = jax.random.uniform(kw, (fan_in, fan_out), f32, -bound, bound)
        b = jax.random.uniform(kb, (1, fan_out), f32, -bound, bound)
        return w, b

    w_cf, b_cf = lin(ks[4], 2 * cf_dim, H)
    w_img1, b_img1 = lin(ks[5], image_dim, H)
    w_img2, b_img2 = lin(ks[6], H, H)
    w_f1, b_f1 = lin(ks[7], 2 * H, H)
    w_f2, b_f2 = lin(ks[8], H, H2)
    w_f3, b_f3 = lin(ks[9], H2, 1)

    return {
        "user_embedding": 0.01 * jax.random.normal(ks[0], (num_users, cf_dim), f32),
        "item_embedding": 0.01 * jax.random.normal(ks[1], (num_items, cf_dim), f32),
        "user_bias": 0.01 * jax.random.normal(ks[2], (num_users, 1), f32),
        "item_bias": 0.01 * jax.random.normal(ks[3], (num_items, 1), f32),
        "global_bias": jnp.zeros((1,), f32),
        "alpha_raw": jnp.array(0.5, f32),
        # cf_projection weight split into user / item halves (re-stacked in wrapper)
        "w_cf_u": w_cf[:cf_dim], "w_cf_i": w_cf[cf_dim:], "b_cf": b_cf,
        "w_img1": w_img1, "b_img1": b_img1,
        "w_img2": w_img2, "b_img2": b_img2,
        # fusion layer-0 weight split into cf_proj / content halves
        "w_f1_a": w_f1[:H], "w_f1_b": w_f1[H:], "b_f1": b_f1,
        "bn_gamma": jnp.ones((H,), f32), "bn_beta": jnp.zeros((H,), f32),
        "bn_mean": jnp.zeros((H,), f32), "bn_var": jnp.ones((H,), f32),
        "w_f2": w_f2, "b_f2": b_f2,
        "w_f3": w_f3, "b_f3": b_f3,
    }


def _reference_forward(params, user_ids, item_ids, image_features):
    """Pure-JAX f32 reference of the PyTorch forward (eval mode)."""
    ue = jnp.take(params["user_embedding"], user_ids, axis=0)
    ie = jnp.take(params["item_embedding"], item_ids, axis=0)
    ub = jnp.take(params["user_bias"], user_ids, axis=0)[:, 0]
    ib = jnp.take(params["item_bias"], item_ids, axis=0)[:, 0]
    cf_pred = jnp.sum(ue * ie, axis=1) + ub + ib + params["global_bias"][0]
    cf_proj = ue @ params["w_cf_u"] + ie @ params["w_cf_i"] + params["b_cf"]
    h = jnp.maximum(image_features @ params["w_img1"] + params["b_img1"], 0.0)
    content = h @ params["w_img2"] + params["b_img2"]
    f = jnp.maximum(cf_proj @ params["w_f1_a"] + content @ params["w_f1_b"]
                    + params["b_f1"], 0.0)
    scale = params["bn_gamma"] / jnp.sqrt(params["bn_var"] + 1e-5)
    f = (f - params["bn_mean"]) * scale + params["bn_beta"]
    g = jnp.maximum(f @ params["w_f2"] + params["b_f2"], 0.0)
    hyb = (g @ params["w_f3"] + params["b_f3"])[:, 0]
    alpha = jax.nn.sigmoid(params["alpha_raw"])
    return alpha * cf_pred + (1 - alpha) * hyb, cf_pred, hyb


if __name__ == "__main__":
    NUM_USERS, NUM_ITEMS = 50, 40
    CF_DIM, IMAGE_DIM, HIDDEN = 64, 128, 64
    BATCH = 8

    key = jax.random.PRNGKey(0)
    kp, ku, ki, kx = jax.random.split(key, 4)

    params = init_params(kp, NUM_USERS, NUM_ITEMS, CF_DIM, IMAGE_DIM, HIDDEN)
    user_ids = jax.random.randint(ku, (BATCH,), 0, NUM_USERS)
    item_ids = jax.random.randint(ki, (BATCH,), 0, NUM_ITEMS)
    image_features = jax.random.normal(kx, (BATCH, IMAGE_DIM), jnp.float32)

    out = hybrid_forward(params, user_ids, item_ids, image_features)
    out = jax.block_until_ready(out)

    assert out["prediction"].shape == (BATCH,)
    assert out["cf_prediction"].shape == (BATCH,)
    assert out["hybrid_prediction"].shape == (BATCH,)

    ref_pred, ref_cf, ref_hyb = _reference_forward(
        params, user_ids, item_ids, image_features)
    assert jnp.allclose(out["cf_prediction"], ref_cf, atol=1e-4, rtol=1e-4)
    assert jnp.allclose(out["hybrid_prediction"], ref_hyb, atol=5e-2, rtol=5e-2)
    assert jnp.allclose(out["prediction"], ref_pred, atol=5e-2, rtol=5e-2)

    print("KERNEL_OK")
</pallas_src>

<mosaic_0001>
module attributes {stable_mosaic.version = 11 : i64} {
  func.func @_hybrid_kernel(%arg0: i32, %arg1: memref<8x128xbf16, #tpu.memory_space<vmem>>, %arg2: memref<8x128xbf16, #tpu.memory_space<vmem>>, %arg3: memref<128x64xbf16, #tpu.memory_space<vmem>>, %arg4: memref<128x64xbf16, #tpu.memory_space<vmem>>, %arg5: memref<4x64x64xbf16, #tpu.memory_space<vmem>>, %arg6: memref<8x64xf32, #tpu.memory_space<vmem>>, %arg7: memref<8x1xf32, #tpu.memory_space<vmem>>) attributes {dimension_semantics = [#tpu.dimension_semantics<parallel>], iteration_bounds = array<i64: 2>, scalar_prefetch = 0 : i64, scratch_operands = 0 : i64, tpu.core_type = #tpu.core_type<tc>, window_params = [{transform_indices = @transform_0, window_bounds = array<i64: 8, 128>}, {transform_indices = @transform_1, window_bounds = array<i64: 8, 128>}, {pipeline_mode = #tpu.pipeline_mode<synchronous>, transform_indices = @transform_2, window_bounds = array<i64: 128, 64>}, {pipeline_mode = #tpu.pipeline_mode<synchronous>, transform_indices = @transform_3, window_bounds = array<i64: 128, 64>}, {pipeline_mode = #tpu.pipeline_mode<synchronous>, transform_indices = @transform_4, window_bounds = array<i64: 4, 64, 64>}, {pipeline_mode = #tpu.pipeline_mode<synchronous>, transform_indices = @transform_5, window_bounds = array<i64: 8, 64>}, {transform_indices = @transform_6, window_bounds = array<i64: 8, 1>}]} {
    %c0 = arith.constant 0 : index
    %c0_0 = arith.constant 0 : index
    %0 = vector.load %arg1[%c0, %c0_0] : memref<8x128xbf16, #tpu.memory_space<vmem>>, vector<8x128xbf16>
    %c0_1 = arith.constant 0 : index
    %c0_2 = arith.constant 0 : index
    %1 = vector.load %arg3[%c0_1, %c0_2] : memref<128x64xbf16, #tpu.memory_space<vmem>>, vector<128x64xbf16>
    %cst = arith.constant dense<0.000000e+00> : vector<8x64xf32>
    %2 = tpu.matmul %0, %1, %cst {dimension_numbers = #tpu.dot_dimension_numbers<[1], [0], [0], [1], [0, 0, 1, 1], [], []>} : vector<8x128xbf16>, vector<128x64xbf16>, vector<8x64xf32> -> vector<8x64xf32>
    %c0_3 = arith.constant 0 : index
    %c0_4 = arith.constant 0 : index
    %3 = vector.load %arg6[%c0_3, %c0_4] : memref<8x64xf32, #tpu.memory_space<vmem>>, vector<1x64xf32>
    %4 = vector.broadcast %3 : vector<1x64xf32> to vector<8x64xf32>
    %5 = arith.addf %2, %4 : vector<8x64xf32>
    %c0_5 = arith.constant 0 : index
    %c0_6 = arith.constant 0 : index
    %6 = vector.load %arg2[%c0_5, %c0_6] : memref<8x128xbf16, #tpu.memory_space<vmem>>, vector<8x128xbf16>
    %c0_7 = arith.constant 0 : index
    %c0_8 = arith.constant 0 : index
    %7 = vector.load %arg4[%c0_7, %c0_8] : memref<128x64xbf16, #tpu.memory_space<vmem>>, vector<128x64xbf16>
    %cst_9 = arith.constant dense<0.000000e+00> : vector<8x64xf32>
    %8 = tpu.matmul %6, %7, %cst_9 {dimension_numbers = #tpu.dot_dimension_numbers<[1], [0], [0], [1], [0, 0, 1, 1], [], []>} : vector<8x128xbf16>, vector<128x64xbf16>, vector<8x64xf32> -> vector<8x64xf32>
    %c1 = arith.constant 1 : index
    %c0_10 = arith.constant 0 : index
    %9 = vector.load %arg6[%c1, %c0_10] : memref<8x64xf32, #tpu.memory_space<vmem>>, vector<1x64xf32>
    %10 = vector.broadcast %9 : vector<1x64xf32> to vector<8x64xf32>
    %11 = arith.addf %8, %10 : vector<8x64xf32>
    %cst_11 = arith.constant 0.000000e+00 : f32
    %12 = vector.broadcast %cst_11 : f32 to vector<8x64xf32>
    %13 = arith.maximumf %11, %12 : vector<8x64xf32>
    %14 = arith.truncf %13 : vector<8x64xf32> to vector<8x64xbf16>
    %c0_12 = arith.constant 0 : index
    %c0_13 = arith.constant 0 : index
    %c0_14 = arith.constant 0 : index
    %15 = vector.load %arg5[%c0_12, %c0_13, %c0_14] : memref<4x64x64xbf16, #tpu.memory_space<vmem>>, vector<1x64x64xbf16>
    %16 = vector.shape_cast %15 : vector<1x64x64xbf16> to vector<64x64xbf16>
    %cst_15 = arith.constant dense<0.000000e+00> : vector<8x64xf32>
    %17 = tpu.matmul %14, %16, %cst_15 {dimension_numbers = #tpu.dot_dimension_numbers<[1], [0], [0], [1], [0, 0, 1, 1], [], []>} : vector<8x64xbf16>, vector<64x64xbf16>, vector<8x64xf32> -> vector<8x64xf32>
    %c2 = arith.constant 2 : index
    %c0_16 = arith.constant 0 : index
    %18 = vector.load %arg6[%c2, %c0_16] : memref<8x64xf32, #tpu.memory_space<vmem>>, vector<1x64xf32>
    %19 = vector.broadcast %18 : vector<1x64xf32> to vector<8x64xf32>
    %20 = arith.addf %17, %19 : vector<8x64xf32>
    %21 = arith.truncf %5 : vector<8x64xf32> to vector<8x64xbf16>
    %c1_17 = arith.constant 1 : index
    %c0_18 = arith.constant 0 : index
    %c0_19 = arith.constant 0 : index
    %22 = vector.load %arg5[%c1_17, %c0_18, %c0_19] : memref<4x64x64xbf16, #tpu.memory_space<vmem>>, vector<1x64x64xbf16>
    %23 = vector.shape_cast %22 : vector<1x64x64xbf16> to vector<64x64xbf16>
    %cst_20 = arith.constant dense<0.000000e+00> : vector<8x64xf32>
    %24 = tpu.matmul %21, %23, %cst_20 {dimension_numbers = #tpu.dot_dimension_numbers<[1], [0], [0], [1], [0, 0, 1, 1], [], []>} : vector<8x64xbf16>, vector<64x64xbf16>, vector<8x64xf32> -> vector<8x64xf32>
    %25 = arith.truncf %20 : vector<8x64xf32> to vector<8x64xbf16>
    %c2_21 = arith.constant 2 : index
    %c0_22 = arith.constant 0 : index
    %c0_23 = arith.constant 0 : index
    %26 = vector.load %arg5[%c2_21, %c0_22, %c0_23] : memref<4x64x64xbf16, #tpu.memory_space<vmem>>, vector<1x64x64xbf16>
    %27 = vector.shape_cast %26 : vector<1x64x64xbf16> to vector<64x64xbf16>
    %cst_24 = arith.constant dense<0.000000e+00> : vector<8x64xf32>
    %28 = tpu.matmul %25, %27, %cst_24 {dimension_numbers = #tpu.dot_dimension_numbers<[1], [0], [0], [1], [0, 0, 1, 1], [], []>} : vector<8x64xbf16>, vector<64x64xbf16>, vector<8x64xf32> -> vector<8x64xf32>
    %29 = arith.addf %24, %28 : vector<8x64xf32>
    %c3 = arith.constant 3 : index
    %c0_25 = arith.constant 0 : index
    %30 = vector.load %arg6[%c3, %c0_25] : memref<8x64xf32, #tpu.memory_space<vmem>>, vector<1x64xf32>
    %31 = vector.broadcast %30 : vector<1x64xf32> to vector<8x64xf32>
    %32 = arith.addf %29, %31 : vector<8x64xf32>
    %cst_26 = arith.constant 0.000000e+00 : f32
    %33 = vector.broadcast %cst_26 : f32 to vector<8x64xf32>
    %34 = arith.maximumf %32, %33 : vector<8x64xf32>
    %c4 = arith.constant 4 : index
    %c0_27 = arith.constant 0 : index
    %35 = vector.load %arg6[%c4, %c0_27] : memref<8x64xf32, #tpu.memory_space<vmem>>, vector<1x64xf32>
    %36 = vector.broadcast %35 : vector<1x64xf32> to vector<8x64xf32>
    %37 = arith.mulf %34, %36 : vector<8x64xf32>
    %c5 = arith.constant 5 : index
    %c0_28 = arith.constant 0 : index
    %38 = vector.load %arg6[%c5, %c0_28] : memref<8x64xf32, #tpu.memory_space<vmem>>, vector<1x64xf32>
    %39 = vector.broadcast %38 : vector<1x64xf32> to vector<8x64xf32>
    %40 = arith.addf %37, %39 : vector<8x64xf32>
    %41 = arith.truncf %40 : vector<8x64xf32> to vector<8x64xbf16>
    %c3_29 = arith.constant 3 : index
    %c0_30 = arith.constant 0 : index
    %c0_31 = arith.constant 0 : index
    %42 = vector.load %arg5[%c3_29, %c0_30, %c0_31] : memref<4x64x64xbf16, #tpu.memory_space<vmem>>, vector<1x64x64xbf16>
    %43 = vector.shape_cast %42 : vector<1x64x64xbf16> to vector<64x64xbf16>
    %cst_32 = arith.constant dense<0.000000e+00> : vector<8x64xf32>
    %44 = tpu.matmul %41, %43, %cst_32 {dimension_numbers = #tpu.dot_dimension_numbers<[1], [0], [0], [1], [0, 0, 1, 1], [], []>} : vector<8x64xbf16>, vector<64x64xbf16>, vector<8x64xf32> -> vector<8x64xf32>
    %c6 = arith.constant 6 : index
    %c0_33 = arith.constant 0 : index
    %45 = vector.load %arg6[%c6, %c0_33] : memref<8x64xf32, #tpu.memory_space<vmem>>, vector<1x64xf32>
    %46 = vector.broadcast %45 : vector<1x64xf32> to vector<8x64xf32>
    %47 = arith.addf %44, %46 : vector<8x64xf32>
    %cst_34 = arith.constant 0.000000e+00 : f32
    %48 = vector.broadcast %cst_34 : f32 to vector<8x64xf32>
    %49 = arith.maximumf %47, %48 : vector<8x64xf32>
    %c7 = arith.constant 7 : index
    %c0_35 = arith.constant 0 : index
    %50 = vector.load %arg6[%c7, %c0_35] : memref<8x64xf32, #tpu.memory_space<vmem>>, vector<1x64xf32>
    %51 = vector.broadcast %50 : vector<1x64xf32> to vector<8x64xf32>
    %52 = arith.mulf %49, %51 : vector<8x64xf32>
    %cst_36 = arith.constant dense<0.000000e+00> : vector<8xf32>
    %53 = vector.multi_reduction <add>, %52, %cst_36 [1] : vector<8x64xf32> to vector<8xf32>
    %54 = vector.shape_cast %53 : vector<8xf32> to vector<8x1xf32>
    %c0_37 = arith.constant 0 : index
    %c0_38 = arith.constant 0 : index
    %55 = vector.load %arg7[%c0_37, %c0_38] : memref<8x1xf32, #tpu.memory_space<vmem>>, vector<8x1xf32>
    tpu.vector_store %arg7[%c0_37, %c0_38], %54 {strides = array<i32>} : memref<8x1xf32, #tpu.memory_space<vmem>>, vector<8x1xf32>,
    return
  }
  func.func @transform_0(%arg0: i32) -> (i32, i32) {
    %c0_i32 = arith.constant 0 : i32
    %c0_i32_0 = arith.constant 0 : i32
    return %arg0, %c0_i32 : i32, i32
  }
  func.func @transform_1(%arg0: i32) -> (i32, i32) {
    %c0_i32 = arith.constant 0 : i32
    %c0_i32_0 = arith.constant 0 : i32
    return %arg0, %c0_i32 : i32, i32
  }
  func.func @transform_2(%arg0: i32) -> (i32, i32) {
    %c0_i32 = arith.constant 0 : i32
    %c0_i32_0 = arith.constant 0 : i32
    %c0_i32_1 = arith.constant 0 : i32
    return %c0_i32, %c0_i32_0 : i32, i32
  }
  func.func @transform_3(%arg0: i32) -> (i32, i32) {
    %c0_i32 = arith.constant 0 : i32
    %c0_i32_0 = arith.constant 0 : i32
    %c0_i32_1 = arith.constant 0 : i32
    return %c0_i32, %c0_i32_0 : i32, i32
  }
  func.func @transform_4(%arg0: i32) -> (i32, i32, i32) {
    %c0_i32 = arith.constant 0 : i32
    %c0_i32_0 = arith.constant 0 : i32
    %c0_i32_1 = arith.constant 0 : i32
    %c0_i32_2 = arith.constant 0 : i32
    return %c0_i32, %c0_i32_0, %c0_i32_1 : i32, i32, i32
  }
  func.func @transform_5(%arg0: i32) -> (i32, i32) {
    %c0_i32 = arith.constant 0 : i32
    %c0_i32_0 = arith.constant 0 : i32
    %c0_i32_1 = arith.constant 0 : i32
    return %c0_i32, %c0_i32_0 : i32, i32
  }
  func.func @transform_6(%arg0: i32) -> (i32, i32) {
    %c0_i32 = arith.constant 0 : i32
    %c0_i32_0 = arith.constant 0 : i32
    return %arg0, %c0_i32 : i32, i32
  }
}

</mosaic_0001>

<llo_original>
// kernel: tpu_custom_call.1
$region0: #{tpu_custom_call.1}
  #allocation0 [shape = 'u32[]', space=smem, size = 0x4, offset = 0x4, fixed_abs, tag = 'smem constant byte address 0x4 - core index']
  #allocation1 [shape = 'u32[144,128]{1,0:T(1,128)}', space=vmem, size = 0x12000, scoped, tag = 'internal scratch']
  %s0 = inlined_call_operand.vmem [shape: bf16[16,128], index: 0, kind: input, shape index: {}]
  %s1 = inlined_call_operand.vmem [shape: bf16[16,128], index: 1, kind: input, shape index: {}]
  %s2 = inlined_call_operand.vmem [shape: bf16[128,64], index: 2, kind: input, shape index: {}]
  %s3 = inlined_call_operand.vmem [shape: bf16[128,64], index: 3, kind: input, shape index: {}]
  %s4 = inlined_call_operand.vmem [shape: bf16[4,64,64], index: 4, kind: input, shape index: {}]
  %s5 = inlined_call_operand.vmem [shape: f32[8,64], index: 5, kind: input, shape index: {}]
  %s6 = inlined_call_operand.vmem [shape: f32[16,1], index: 6, kind: output, shape index: {}]
  %s7 = sld [smem:[#allocation0]]
  $region57: #{tpu_custom_call.1} parent=0
    _
  %s9 = ssub.s32 1, %s7
  %s10 = scalar_select 0, %s9, %s7
  loop: start=0, step=1, limit=4
  $region2: #{tpu_custom_call.1} parent=0 // loop_pre_header
    _
  $region3: #{tpu_custom_call.1} parent=0 // loop_header
    %s12 = sphi 0, %s16
    %p13 = scmp.ge.s32.totalorder %s12, 4
    %s22 = sphi 0, %s24
    %s25 = sphi 0, %s22
    %s26 = sphi 0, %s25
    %s42 = sphi 0, %s26
    %s48 = sphi 0, %s50
    %s51 = sphi 0, %s48
    %s52 = sphi 0, %s51
    %s68 = sphi 0, %s52
    %s72 = sphi 0, %s72
    %s74 = sphi 0, %s72
    %s75 = sphi 0, %s74
    %s89 = sphi 0, %s75
    %s93 = sphi 0, %s93
    %s95 = sphi 0, %s93
    %s96 = sphi 0, %s95
    %s110 = sphi 0, %s96
    %s114 = sphi 0, %s114
    %s116 = sphi 0, %s114
    %s117 = sphi 0, %s116
    %s131 = sphi 0, %s117
    %s135 = sphi 0, %s135
    %s137 = sphi 0, %s135
    %s138 = sphi 0, %s137
    %s152 = sphi 0, %s138
    %s158 = sphi 0, %s160
    %s161 = sphi 0, %s158
    %s162 = sphi 0, %s161
    %s178 = sphi 0, %s162
  $region4: #{tpu_custom_call.1} parent=0 // loop_header_branch
    %15 = sbr.rel (%p13) target = $region8
  $region5: #{tpu_custom_call.1} parent=0 // loop_body
    %s17 = ssub.s32 %s12, 1
    %s18 = ssub.s32 %s12, 2
    %s19 = sadd.s32 %s12, 1
    %s20 = ssub.s32 %s12, %s19
    %p21 = scmp.eq.s32.totalorder %s20, 0
    %s23 = sadd.s32 %s22, 1
    %s24 = scalar_select %p21, %s22, %s23
    %p27 = pneg %p21
    %p28 = scmp.eq.s32.totalorder %s12, 1
    %p29 = por %p27, %p28
    %p30 = scmp.ne.s32.totalorder %s22, %s25
    %p31 = scmp.eq.s32.totalorder %s12, 0
    %p32 = por %p30, %p31
    %p33 = scmp.ne.s32.totalorder %s22, %s25
    %p34 = scmp.eq.s32.totalorder %s17, 1
    %p35 = por %p33, %p34
    %p36 = scmp.ne.s32.totalorder %s25, %s26
    %p37 = scmp.eq.s32.totalorder %s17, 0
    %p38 = por %p36, %p37
    %p39 = scmp.ne.s32.totalorder %s25, %s26
    %p40 = scmp.eq.s32.totalorder %s18, 1
    %p41 = por %p39, %p40
    %p43 = scmp.ne.s32.totalorder %s26, %s42
    %p44 = scmp.eq.s32.totalorder %s18, 0
    %p45 = por %p43, %p44
    %s46 = ssub.s32 %s12, %s19
    %p47 = scmp.eq.s32.totalorder %s46, 0
    %s49 = sadd.s32 %s48, 1
    %s50 = scalar_select %p47, %s48, %s49
    %p53 = pneg %p47
    %p54 = scmp.eq.s32.totalorder %s12, 1
    %p55 = por %p53, %p54
    %p56 = scmp.ne.s32.totalorder %s48, %s51
    %p57 = scmp.eq.s32.totalorder %s12, 0
    %p58 = por %p56, %p57
    %p59 = scmp.ne.s32.totalorder %s48, %s51
    %p60 = scmp.eq.s32.totalorder %s17, 1
    %p61 = por %p59, %p60
    %p62 = scmp.ne.s32.totalorder %s51, %s52
    %p63 = scmp.eq.s32.totalorder %s17, 0
    %p64 = por %p62, %p63
    %p65 = scmp.ne.s32.totalorder %s51, %s52
    %p66 = scmp.eq.s32.totalorder %s18, 1
    %p67 = por %p65, %p66
    %p69 = scmp.ne.s32.totalorder %s52, %s68
    %p70 = scmp.eq.s32.totalorder %s18, 0
    %p71 = por %p69, %p70
    %s73 = sadd.s32 %s72, 1
    %p76 = scmp.eq.s32.totalorder %s12, 1
    %p77 = scmp.ne.s32.totalorder %s72, %s74
    %p78 = scmp.eq.s32.totalorder %s12, 0
    %p79 = por %p77, %p78
    %p80 = scmp.ne.s32.totalorder %s72, %s74
    %p81 = scmp.eq.s32.totalorder %s17, 1
    %p82 = por %p80, %p81
    %p83 = scmp.ne.s32.totalorder %s74, %s75
    %p84 = scmp.eq.s32.totalorder %s17, 0
    %p85 = por %p83, %p84
    %p86 = scmp.ne.s32.totalorder %s74, %s75
    %p87 = scmp.eq.s32.totalorder %s18, 1
    %p88 = por %p86, %p87
    %p90 = scmp.ne.s32.totalorder %s75, %s89
    %p91 = scmp.eq.s32.totalorder %s18, 0
    %p92 = por %p90, %p91
    %s94 = sadd.s32 %s93, 1
    %p97 = scmp.eq.s32.totalorder %s12, 1
    %p98 = scmp.ne.s32.totalorder %s93, %s95
    %p99 = scmp.eq.s32.totalorder %s12, 0
    %p100 = por %p98, %p99
    %p101 = scmp.ne.s32.totalorder %s93, %s95
    %p102 = scmp.eq.s32.totalorder %s17, 1
    %p103 = por %p101, %p102
    %p104 = scmp.ne.s32.totalorder %s95, %s96
    %p105 = scmp.eq.s32.totalorder %s17, 0
    %p106 = por %p104, %p105
    %p107 = scmp.ne.s32.totalorder %s95, %s96
    %p108 = scmp.eq.s32.totalorder %s18, 1
    %p109 = por %p107, %p108
    %p111 = scmp.ne.s32.totalorder %s96, %s110
    %p112 = scmp.eq.s32.totalorder %s18, 0
    %p113 = por %p111, %p112
    %s115 = sadd.s32 %s114, 1
    %p118 = scmp.eq.s32.totalorder %s12, 1
    %p119 = scmp.ne.s32.totalorder %s114, %s116
    %p120 = scmp.eq.s32.totalorder %s12, 0
    %p121 = por %p119, %p120
    %p122 = scmp.ne.s32.totalorder %s114, %s116
    %p123 = scmp.eq.s32.totalorder %s17, 1
    %p124 = por %p122, %p123
    %p125 = scmp.ne.s32.totalorder %s116, %s117
    %p126 = scmp.eq.s32.totalorder %s17, 0
    %p127 = por %p125, %p126
    %p128 = scmp.ne.s32.totalorder %s116, %s117
    %p129 = scmp.eq.s32.totalorder %s18, 1
    %p130 = por %p128, %p129
    %p132 = scmp.ne.s32.totalorder %s117, %s131
    %p133 = scmp.eq.s32.totalorder %s18, 0
    %p134 = por %p132, %p133
    %s136 = sadd.s32 %s135, 1
    %p139 = scmp.eq.s32.totalorder %s12, 1
    %p140 = scmp.ne.s32.totalorder %s135, %s137
    %p141 = scmp.eq.s32.totalorder %s12, 0
    %p142 = por %p140, %p141
    %p143 = scmp.ne.s32.totalorder %s135, %s137
    %p144 = scmp.eq.s32.totalorder %s17, 1
    %p145 = por %p143, %p144
    %p146 = scmp.ne.s32.totalorder %s137, %s138
    %p147 = scmp.eq.s32.totalorder %s17, 0
    %p148 = por %p146, %p147
    %p149 = scmp.ne.s32.totalorder %s137, %s138
    %p150 = scmp.eq.s32.totalorder %s18, 1
    %p151 = por %p149, %p150
    %p153 = scmp.ne.s32.totalorder %s138, %s152
    %p154 = scmp.eq.s32.totalorder %s18, 0
    %p155 = por %p153, %p154
    %s156 = ssub.s32 %s12, %s19
    %p157 = scmp.eq.s32.totalorder %s156, 0
    %s159 = sadd.s32 %s158, 1
    %s160 = scalar_select %p157, %s158, %s159
    %p163 = pneg %p157
    %p164 = scmp.eq.s32.totalorder %s12, 1
    %p165 = por %p163, %p164
    %p166 = scmp.ne.s32.totalorder %s158, %s161
    %p167 = scmp.eq.s32.totalorder %s12, 0
    %p168 = por %p166, %p167
    %p169 = scmp.ne.s32.totalorder %s158, %s161
    %p170 = scmp.eq.s32.totalorder %s17, 1
    %p171 = por %p169, %p170
    %p172 = scmp.ne.s32.totalorder %s161, %s162
    %p173 = scmp.eq.s32.totalorder %s17, 0
    %p174 = por %p172, %p173
    %p175 = scmp.ne.s32.totalorder %s161, %s162
    %p176 = scmp.eq.s32.totalorder %s18, 1
    %p177 = por %p175, %p176
    %p179 = scmp.ne.s32.totalorder %s162, %s178
    %p180 = scmp.eq.s32.totalorder %s18, 0
    %p181 = por %p179, %p180
    %p182 = scmp.le.s32.totalorder 1, %s12
    %p183 = scmp.lt.s32.totalorder %s12, 3
    %p184 = pnand %p182, %p183
    %p185 = pneg %p184
    // Predicated region
    $region9: #{tpu_custom_call.1} parent=5 // pred_check
      _
    $region10: #{tpu_custom_call.1} parent=5 // pred_check_branch
      %187 = sbr.rel (%p184) target = $region12
    $region11: #{tpu_custom_call.1} parent=5 // pred_region
      %s188 = ssub.s32 %s12, 1
      // Predicated region
      $region13: #{tpu_custom_call.1} parent=11 // pred_check
        %p189 = pneg %p85
      $region14: #{tpu_custom_call.1} parent=11 // pred_check_branch
        %191 = sbr.rel (%p189) target = $region16
      $region15: #{tpu_custom_call.1} parent=11 // pred_region
        _
      $region16: #{tpu_custom_call.1} parent=11 // pred_fallthru
        _
      // Predicated region
      $region17: #{tpu_custom_call.1} parent=11 // pred_check
        %p192 = pneg %p106
      $region18: #{tpu_custom_call.1} parent=11 // pred_check_branch
        %194 = sbr.rel (%p192) target = $region20
      $region19: #{tpu_custom_call.1} parent=11 // pred_region
        _
      $region20: #{tpu_custom_call.1} parent=11 // pred_fallthru
        _
      // Predicated region
      $region21: #{tpu_custom_call.1} parent=11 // pred_check
        %p195 = pneg %p127
      $region22: #{tpu_custom_call.1} parent=11 // pred_check_branch
        %197 = sbr.rel (%p195) target = $region24
      $region23: #{tpu_custom_call.1} parent=11 // pred_region
        _
      $region24: #{tpu_custom_call.1} parent=11 // pred_fallthru
        _
      // Predicated region
      $region25: #{tpu_custom_call.1} parent=11 // pred_check
        %p198 = pneg %p148
      $region26: #{tpu_custom_call.1} parent=11 // pred_check_branch
        %200 = sbr.rel (%p198) target = $region28
      $region27: #{tpu_custom_call.1} parent=11 // pred_region
        _
      $region28: #{tpu_custom_call.1} parent=11 // pred_fallthru
        _
    $region12: #{tpu_custom_call.1} parent=5 // pred_fallthru
      _
    %p201 = scmp.lt.s32.totalorder %s12, 2
    // Predicated region
    $region29: #{tpu_custom_call.1} parent=5 // pred_check
      %p202 = pneg %p201
    $region30: #{tpu_custom_call.1} parent=5 // pred_check_branch
      %204 = sbr.rel (%p202) target = $region32
    $region31: #{tpu_custom_call.1} parent=5 // pred_region
      // Predicated region
      $region33: #{tpu_custom_call.1} parent=31 // pred_check
        %p205 = pneg %p32
      $region34: #{tpu_custom_call.1} parent=31 // pred_check_branch
        %207 = sbr.rel (%p205) target = $region36
      $region35: #{tpu_custom_call.1} parent=31 // pred_region
        %p208 = scmp.lt.s32.totalorder %s12, 1
        %s209 = scalar_select %p208, %s12, 1
        %s210 = smul.addr %s209, 4
        %s211 = scalar_lea.vmem %s0, %s210
      $region36: #{tpu_custom_call.1} parent=31 // pred_fallthru
        _
      // Predicated region
      $region37: #{tpu_custom_call.1} parent=31 // pred_check
        %p212 = pneg %p58
      $region38: #{tpu_custom_call.1} parent=31 // pred_check_branch
        %214 = sbr.rel (%p212) target = $region40
      $region39: #{tpu_custom_call.1} parent=31 // pred_region
        %p215 = scmp.lt.s32.totalorder %s12, 1
        %s216 = scalar_select %p215, %s12, 1
        %s217 = smul.addr %s216, 4
        %s218 = scalar_lea.vmem %s1, %s217
      $region40: #{tpu_custom_call.1} parent=31 // pred_fallthru
        _
    $region32: #{tpu_custom_call.1} parent=5 // pred_fallthru
      _
    %p219 = scmp.le.s32.totalorder 1, %s12
    %p220 = scmp.lt.s32.totalorder %s12, 3
    %p221 = pnand %p219, %p220
    %p222 = pneg %p221
    // Predicated region
    $region41: #{tpu_custom_call.1} parent=5 // pred_check
      _
    $region42: #{tpu_custom_call.1} parent=5 // pred_check_branch
      %224 = sbr.rel (%p221) target = $region44
    $region43: #{tpu_custom_call.1} parent=5 // pred_region
      %s225 = ssub.s32 %s12, 1
      %p226 = scmp.lt.s32.totalorder %s17, 1
      %s227 = scalar_select %p226, %s17, 1
      %s228 = smul.addr %s227, 4
      %s229 = scalar_lea.vmem %s0, %s228
      %p230 = pneg %p38
      %p231 = pneg %p35
      %p232 = scmp.lt.s32.totalorder %s17, 1
      %s233 = scalar_select %p232, %s17, 1
      %s234 = smul.addr %s233, 4
      %s235 = scalar_lea.vmem %s1, %s234
      %p236 = pneg %p64
      %p237 = pneg %p61
      %p238 = pneg %p85
      %p239 = pneg %p82
      %p240 = pneg %p106
      %p241 = pneg %p103
      %p242 = pneg %p127
      %p243 = pneg %p124
      %p244 = pneg %p148
      %p245 = pneg %p145
      %p246 = pneg %p174
      %p247 = pneg %p171
      %p248 = scmp.lt.s32.totalorder %s17, 1
      %s249 = scalar_select %p248, %s17, 1
      %s250 = smul.addr %s249, 8
      %s251 = scalar_lea.vmem %s6, %s250
      %p252 = scmp.lt.s32.totalorder %s17, 1
      %s253 = scalar_select %p252, %s17, 1
      %s254 = smul.addr %s253, 4
      %s255 = scalar_lea.vmem %s0, %s254
      %p256 = scmp.lt.s32.totalorder %s17, 1
      %s257 = scalar_select %p256, %s17, 1
      %s258 = smul.addr %s257, 4
      %s259 = scalar_lea.vmem %s1, %s258
      %p260 = scmp.lt.s32.totalorder %s17, 1
      %s261 = scalar_select %p260, %s17, 1
      %s262 = smul.addr %s261, 8
      %s263 = scalar_lea.vmem %s6, %s262
      %v265 = vld [vmem:[%s255] sm:$0xf]
      %v266 = vld [vmem:[%s2] sm:$0xf]
      %v267 = vld [vmem:[%s2 + $0x4] sm:$0xf]
      %v268 = vld [vmem:[%s2 + $0x8] sm:$0xf]
      %v269 = vld [vmem:[%s2 + $0xc] sm:$0xf]
      %v270 = vld [vmem:[%s2 + $0x10] sm:$0xf]
      %v271 = vld [vmem:[%s2 + $0x14] sm:$0xf]
      %v272 = vld [vmem:[%s2 + $0x18] sm:$0xf]
      %v273 = vld [vmem:[%s2 + $0x1c] sm:$0xf]
      %v274 = vld [vmem:[%s2 + $0x20] sm:$0xf]
      %v275 = vld [vmem:[%s2 + $0x24] sm:$0xf]
      %v276 = vld [vmem:[%s2 + $0x28] sm:$0xf]
      %v277 = vld [vmem:[%s2 + $0x2c] sm:$0xf]
      %v278 = vld [vmem:[%s2 + $0x30] sm:$0xf]
      %v279 = vld [vmem:[%s2 + $0x34] sm:$0xf]
      %v280 = vld [vmem:[%s2 + $0x38] sm:$0xf]
      %v281 = vld [vmem:[%s2 + $0x3c] sm:$0xf]
      %v282 = vld [vmem:[%s5] sm:$0x1]
      %v283 = vlaneseq
      %v284 = vshrl.u32 %v283, 7
      %v285 = vsub.s32 0, %v284
      %v286 = vrot.slane %v282, %v285
      %v303 = vunpack.c.l.b16 %v266
      %v304 = vunpack.c.l.b16 %v267
      %v305 = vunpack.c.l.b16 %v268
      %v306 = vunpack.c.l.b16 %v269
      %v307 = vunpack.c.l.b16 %v270
      %v308 = vunpack.c.l.b16 %v271
      %v309 = vunpack.c.l.b16 %v272
      %v310 = vunpack.c.l.b16 %v273
      %v311 = vunpack.c.l.b16 %v274
      %v312 = vunpack.c.l.b16 %v275
      %v313 = vunpack.c.l.b16 %v276
      %v314 = vunpack.c.l.b16 %v277
      %v315 = vunpack.c.l.b16 %v278
      %v316 = vunpack.c.l.b16 %v279
      %v317 = vunpack.c.l.b16 %v280
      %v318 = vunpack.c.l.b16 %v281
      %v319 = vpack.c.b16 %v304, %v303
      %v320 = vpack.c.b16 %v306, %v305
      %v321 = vpack.c.b16 %v308, %v307
      %v322 = vpack.c.b16 %v310, %v309
      %v323 = vpack.c.b16 %v312, %v311
      %v324 = vpack.c.b16 %v314, %v313
      %v325 = vpack.c.b16 %v316, %v315
      %v326 = vpack.c.b16 %v318, %v317
      %335 = vmatprep.subr.bf16.mxu0 0
      %336 = vmatpush1.bf16.msra.mxu0 %v319
      %337 = vmatprep.subr.bf16.mxu0 0
      %338 = vmatpush1.bf16.msra.mxu0 %v320
      %339 = vmatprep.subr.bf16.mxu0 0
      %340 = vmatpush1.bf16.msra.mxu0 %v321
      %341 = vmatprep.subr.bf16.mxu0 0
      %342 = vmatpush1.bf16.msra.mxu0 %v322
      %343 = vmatprep.subr.bf16.mxu0 0
      %344 = vmatpush1.bf16.msra.mxu0 %v323
      %345 = vmatprep.subr.bf16.mxu0 0
      %346 = vmatpush1.bf16.msra.mxu0 %v324
      %347 = vmatprep.subr.bf16.mxu0 0
      %348 = vmatpush1.bf16.msra.mxu0 %v325
      %349 = vmatprep.subr.bf16.mxu0 0
      %350 = vmatpush1.bf16.msra.mxu0 %v326
      %351 = vmatprep.subr.bf16.mxu0 0
      %352 = vmatpush1.bf16.msra.mxu0 0
      %353 = vmatprep.subr.bf16.mxu0 0
      %354 = vmatpush1.bf16.msra.mxu0 0
      %355 = vmatprep.subr.bf16.mxu0 0
      %356 = vmatpush1.bf16.msra.mxu0 0
      %357 = vmatprep.subr.bf16.mxu0 0
      %358 = vmatpush1.bf16.msra.mxu0 0
      %359 = vmatprep.subr.bf16.mxu0 0
      %360 = vmatpush1.bf16.msra.mxu0 0
      %361 = vmatprep.subr.bf16.mxu0 0
      %362 = vmatpush1.bf16.msra.mxu0 0
      %363 = vmatprep.subr.bf16.mxu0 0
      %364 = vmatpush1.bf16.msra.mxu0 0
      %365 = vmatprep.subr.bf16.mxu0 0
      %366 = vmatpush1.bf16.msra.mxu0 0
      %367 = vmatprep.mubr.bf16.mxu0 0
      %368 = vmatmul.mubr.bf16.gmra.mrb[0].mxu0 %v265
      %v369 = vpop.f32.mrb[0].mxu0
      %v370 = vadd.f32 %v286, %v369
      %v371 = vpop.f32.mrb[0].mxu0
      %v372 = vpop.f32.mrb[0].mxu0
      %v373 = vpop.f32.mrb[0].mxu0
      %374 = vdwg.mxu0
      %v375 = vld [vmem:[%s259] sm:$0xf]
      %v376 = vld [vmem:[%s3] sm:$0xf]
      %v377 = vld [vmem:[%s3 + $0x4] sm:$0xf]
      %v378 = vld [vmem:[%s3 + $0x8] sm:$0xf]
      %v379 = vld [vmem:[%s3 + $0xc] sm:$0xf]
      %v380 = vld [vmem:[%s3 + $0x10] sm:$0xf]
      %v381 = vld [vmem:[%s3 + $0x14] sm:$0xf]
      %v382 = vld [vmem:[%s3 + $0x18] sm:$0xf]
      %v383 = vld [vmem:[%s3 + $0x1c] sm:$0xf]
      %v384 = vld [vmem:[%s3 + $0x20] sm:$0xf]
      %v385 = vld [vmem:[%s3 + $0x24] sm:$0xf]
      %v386 = vld [vmem:[%s3 + $0x28] sm:$0xf]
      %v387 = vld [vmem:[%s3 + $0x2c] sm:$0xf]
      %v388 = vld [vmem:[%s3 + $0x30] sm:$0xf]
      %v389 = vld [vmem:[%s3 + $0x34] sm:$0xf]
      %v390 = vld [vmem:[%s3 + $0x38] sm:$0xf]
      %v391 = vld [vmem:[%s3 + $0x3c] sm:$0xf]
      %v392 = vld [vmem:[%s5 + $0x1] sm:$0x1]
      %v393 = vlaneseq
      %v394 = vshrl.u32 %v393, 7
      %v395 = vsub.s32 0, %v394
      %v396 = vrot.slane %v392, %v395
      %v413 = vunpack.c.l.b16 %v376
      %v414 = vunpack.c.l.b16 %v377
      %v415 = vunpack.c.l.b16 %v378
      %v416 = vunpack.c.l.b16 %v379
      %v417 = vunpack.c.l.b16 %v380
      %v418 = vunpack.c.l.b16 %v381
      %v419 = vunpack.c.l.b16 %v382
      %v420 = vunpack.c.l.b16 %v383
      %v421 = vunpack.c.l.b16 %v384
      %v422 = vunpack.c.l.b16 %v385
      %v423 = vunpack.c.l.b16 %v386
      %v424 = vunpack.c.l.b16 %v387
      %v425 = vunpack.c.l.b16 %v388
      %v426 = vunpack.c.l.b16 %v389
      %v427 = vunpack.c.l.b16 %v390
      %v428 = vunpack.c.l.b16 %v391
      %v429 = vpack.c.b16 %v414, %v413
      %v430 = vpack.c.b16 %v416, %v415
      %v431 = vpack.c.b16 %v418, %v417
      %v432 = vpack.c.b16 %v420, %v419
      %v433 = vpack.c.b16 %v422, %v421
      %v434 = vpack.c.b16 %v424, %v423
      %v435 = vpack.c.b16 %v426, %v425
      %v436 = vpack.c.b16 %v428, %v427
      %445 = vmatprep.subr.bf16.mxu0 0
      %446 = vmatpush1.bf16.msra.mxu0 %v429
      %447 = vmatprep.subr.bf16.mxu0 0
      %448 = vmatpush1.bf16.msra.mxu0 %v430
      %449 = vmatprep.subr.bf16.mxu0 0
      %450 = vmatpush1.bf16.msra.mxu0 %v431
      %451 = vmatprep.subr.bf16.mxu0 0
      %452 = vmatpush1.bf16.msra.mxu0 %v432
      %453 = vmatprep.subr.bf16.mxu0 0
      %454 = vmatpush1.bf16.msra.mxu0 %v433
      %455 = vmatprep.subr.bf16.mxu0 0
      %456 = vmatpush1.bf16.msra.mxu0 %v434
      %457 = vmatprep.subr.bf16.mxu0 0
      %458 = vmatpush1.bf16.msra.mxu0 %v435
      %459 = vmatprep.subr.bf16.mxu0 0
      %460 = vmatpush1.bf16.msra.mxu0 %v436
      %461 = vmatprep.subr.bf16.mxu0 0
      %462 = vmatpush1.bf16.msra.mxu0 0
      %463 = vmatprep.subr.bf16.mxu0 0
      %464 = vmatpush1.bf16.msra.mxu0 0
      %465 = vmatprep.subr.bf16.mxu0 0
      %466 = vmatpush1.bf16.msra.mxu0 0
      %467 = vmatprep.subr.bf16.mxu0 0
      %468 = vmatpush1.bf16.msra.mxu0 0
      %469 = vmatprep.subr.bf16.mxu0 0
      %470 = vmatpush1.bf16.msra.mxu0 0
      %471 = vmatprep.subr.bf16.mxu0 0
      %472 = vmatpush1.bf16.msra.mxu0 0
      %473 = vmatprep.subr.bf16.mxu0 0
      %474 = vmatpush1.bf16.msra.mxu0 0
      %475 = vmatprep.subr.bf16.mxu0 0
      %476 = vmatpush1.bf16.msra.mxu0 0
      %477 = vmatprep.mubr.bf16.mxu0 0
      %478 = vmatmul.mubr.bf16.gmra.mrb[0].mxu0 %v375
      %v479 = vpop.f32.mrb[0].mxu0
      %v480 = vadd.f32 %v396, %v479
      %v481 = vpop.f32.mrb[0].mxu0
      %v482 = vpop.f32.mrb[0].mxu0
      %v483 = vpop.f32.mrb[0].mxu0
      %484 = vdwg.mxu0
      %v485 = vmax.f32 %v480, 0.0
      %v486 = vpack.c.bf16 %v485, %v485
      %v487 = vld [vmem:[%s4] sm:$0xf]
      %v488 = vld [vmem:[%s4 + $0x4] sm:$0xf]
      %v489 = vld [vmem:[%s4 + $0x8] sm:$0xf]
      %v490 = vld [vmem:[%s4 + $0xc] sm:$0xf]
      %v491 = vld [vmem:[%s4 + $0x10] sm:$0xf]
      %v492 = vld [vmem:[%s4 + $0x14] sm:$0xf]
      %v493 = vld [vmem:[%s4 + $0x18] sm:$0xf]
      %v494 = vld [vmem:[%s4 + $0x1c] sm:$0xf]
      %v495 = vld [vmem:[%s5 + $0x2] sm:$0x1]
      %v496 = vlaneseq
      %v497 = vshrl.u32 %v496, 7
      %v498 = vsub.s32 0, %v497
      %v499 = vrot.slane %v495, %v498
      %v508 = vunpack.c.l.b16 %v487
      %v509 = vunpack.c.l.b16 %v488
      %v510 = vunpack.c.l.b16 %v489
      %v511 = vunpack.c.l.b16 %v490
      %v512 = vunpack.c.l.b16 %v491
      %v513 = vunpack.c.l.b16 %v492
      %v514 = vunpack.c.l.b16 %v493
      %v515 = vunpack.c.l.b16 %v494
      %v516 = vpack.c.b16 %v509, %v508
      %v517 = vpack.c.b16 %v511, %v510
      %v518 = vpack.c.b16 %v513, %v512
      %v519 = vpack.c.b16 %v515, %v514
      %vm524 = vcmask 523264
      %v526 = vsel %vm524, %v486, 0
      %528 = vmatprep.subr.bf16.mxu0 0
      %529 = vmatpush1.bf16.msra.mxu0 %v516
      %530 = vmatprep.subr.bf16.mxu0 0
      %531 = vmatpush1.bf16.msra.mxu0 %v517
      %532 = vmatprep.subr.bf16.mxu0 0
      %533 = vmatpush1.bf16.msra.mxu0 %v518
      %534 = vmatprep.subr.bf16.mxu0 0
      %535 = vmatpush1.bf16.msra.mxu0 %v519
      %536 = vmatprep.subr.bf16.mxu0 0
      %537 = vmatpush1.bf16.msra.mxu0 0
      %538 = vmatprep.subr.bf16.mxu0 0
      %539 = vmatpush1.bf16.msra.mxu0 0
      %540 = vmatprep.subr.bf16.mxu0 0
      %541 = vmatpush1.bf16.msra.mxu0 0
      %542 = vmatprep.subr.bf16.mxu0 0
      %543 = vmatpush1.bf16.msra.mxu0 0
      %544 = vmatprep.subr.bf16.mxu0 0
      %545 = vmatpush1.bf16.msra.mxu0 0
      %546 = vmatprep.subr.bf16.mxu0 0
      %547 = vmatpush1.bf16.msra.mxu0 0
      %548 = vmatprep.subr.bf16.mxu0 0
      %549 = vmatpush1.bf16.msra.mxu0 0
      %550 = vmatprep.subr.bf16.mxu0 0
      %551 = vmatpush1.bf16.msra.mxu0 0
      %552 = vmatprep.subr.bf16.mxu0 0
      %553 = vmatpush1.bf16.msra.mxu0 0
      %554 = vmatprep.subr.bf16.mxu0 0
      %555 = vmatpush1.bf16.msra.mxu0 0
      %556 = vmatprep.subr.bf16.mxu0 0
      %557 = vmatpush1.bf16.msra.mxu0 0
      %558 = vmatprep.subr.bf16.mxu0 0
      %559 = vmatpush1.bf16.msra.mxu0 0
      %560 = vmatprep.mubr.bf16.mxu0 0
      %561 = vmatmul.mubr.bf16.gmra.mrb[0].mxu0 %v526
      %v562 = vpop.f32.mrb[0].mxu0
      %v563 = vadd.f32 %v499, %v562
      %v564 = vpop.f32.mrb[0].mxu0
      %v565 = vpop.f32.mrb[0].mxu0
      %v566 = vpop.f32.mrb[0].mxu0
      %567 = vdwg.mxu0
      %v568 = vpack.c.bf16 %v370, %v370
      %s569 = scalar_lea.vmem %s4, 32
      %v570 = vld [vmem:[%s569] sm:$0xf]
      %v571 = vld [vmem:[%s569 + $0x4] sm:$0xf]
      %v572 = vld [vmem:[%s569 + $0x8] sm:$0xf]
      %v573 = vld [vmem:[%s569 + $0xc] sm:$0xf]
      %v574 = vld [vmem:[%s569 + $0x10] sm:$0xf]
      %v575 = vld [vmem:[%s569 + $0x14] sm:$0xf]
      %v576 = vld [vmem:[%s569 + $0x18] sm:$0xf]
      %v577 = vld [vmem:[%s569 + $0x1c] sm:$0xf]
      %v578 = vpack.c.bf16 %v563, %v563
      %s579 = scalar_lea.vmem %s4, 64
      %v580 = vld [vmem:[%s579] sm:$0xf]
      %v581 = vld [vmem:[%s579 + $0x4] sm:$0xf]
      %v582 = vld [vmem:[%s579 + $0x8] sm:$0xf]
      %v583 = vld [vmem:[%s579 + $0xc] sm:$0xf]
      %v584 = vld [vmem:[%s579 + $0x10] sm:$0xf]
      %v585 = vld [vmem:[%s579 + $0x14] sm:$0xf]
      %v586 = vld [vmem:[%s579 + $0x18] sm:$0xf]
      %v587 = vld [vmem:[%s579 + $0x1c] sm:$0xf]
      %v596 = vunpack.c.l.b16 %v580
      %v597 = vunpack.c.l.b16 %v581
      %v598 = vunpack.c.l.b16 %v582
      %v599 = vunpack.c.l.b16 %v583
      %v600 = vunpack.c.l.b16 %v584
      %v601 = vunpack.c.l.b16 %v585
      %v602 = vunpack.c.l.b16 %v586
      %v603 = vunpack.c.l.b16 %v587
      %v604 = vpack.c.b16 %v597, %v596
      %v605 = vpack.c.b16 %v599, %v598
      %v606 = vpack.c.b16 %v601, %v600
      %v607 = vpack.c.b16 %v603, %v602
      %v613 = vsel %vm524, %v578, 0
      %615 = vmatprep.subr.bf16.mxu0 0
      %616 = vmatpush1.bf16.msra.mxu0 %v604
      %617 = vmatprep.subr.bf16.mxu0 0
      %618 = vmatpush1.bf16.msra.mxu0 %v605
      %619 = vmatprep.subr.bf16.mxu0 0
      %620 = vmatpush1.bf16.msra.mxu0 %v606
      %621 = vmatprep.subr.bf16.mxu0 0
      %622 = vmatpush1.bf16.msra.mxu0 %v607
      %623 = vmatprep.subr.bf16.mxu0 0
      %624 = vmatpush1.bf16.msra.mxu0 0
      %625 = vmatprep.subr.bf16.mxu0 0
      %626 = vmatpush1.bf16.msra.mxu0 0
      %627 = vmatprep.subr.bf16.mxu0 0
      %628 = vmatpush1.bf16.msra.mxu0 0
      %629 = vmatprep.subr.bf16.mxu0 0
      %630 = vmatpush1.bf16.msra.mxu0 0
      %631 = vmatprep.subr.bf16.mxu0 0
      %632 = vmatpush1.bf16.msra.mxu0 0
      %633 = vmatprep.subr.bf16.mxu0 0
      %634 = vmatpush1.bf16.msra.mxu0 0
      %635 = vmatprep.subr.bf16.mxu0 0
      %636 = vmatpush1.bf16.msra.mxu0 0
      %637 = vmatprep.subr.bf16.mxu0 0
      %638 = vmatpush1.bf16.msra.mxu0 0
      %639 = vmatprep.subr.bf16.mxu0 0
      %640 = vmatpush1.bf16.msra.mxu0 0
      %641 = vmatprep.subr.bf16.mxu0 0
      %642 = vmatpush1.bf16.msra.mxu0 0
      %643 = vmatprep.subr.bf16.mxu0 0
      %644 = vmatpush1.bf16.msra.mxu0 0
      %645 = vmatprep.subr.bf16.mxu0 0
      %646 = vmatpush1.bf16.msra.mxu0 0
      %647 = vmatprep.mubr.bf16.mxu0 0
      %648 = vmatmul.mubr.bf16.gmra.mrb[0].mxu0 %v613
      %v649 = vpop.f32.mrb[0].mxu0
      %v650 = vadd.f32 0.0, %v649
      %v651 = vpop.f32.mrb[0].mxu0
      %v652 = vpop.f32.mrb[0].mxu0
      %v653 = vpop.f32.mrb[0].mxu0
      %654 = vdwg.mxu0
      %v663 = vunpack.c.l.b16 %v570
      %v664 = vunpack.c.l.b16 %v571
      %v665 = vunpack.c.l.b16 %v572
      %v666 = vunpack.c.l.b16 %v573
      %v667 = vunpack.c.l.b16 %v574
      %v668 = vunpack.c.l.b16 %v575
      %v669 = vunpack.c.l.b16 %v576
      %v670 = vunpack.c.l.b16 %v577
      %v671 = vpack.c.b16 %v664, %v663
      %v672 = vpack.c.b16 %v666, %v665
      %v673 = vpack.c.b16 %v668, %v667
      %v674 = vpack.c.b16 %v670, %v669
      %v680 = vsel %vm524, %v568, 0
      %682 = vmatprep.subr.bf16.mxu0 0
      %683 = vmatpush1.bf16.msra.mxu0 %v671
      %684 = vmatprep.subr.bf16.mxu0 0
      %685 = vmatpush1.bf16.msra.mxu0 %v672
      %686 = vmatprep.subr.bf16.mxu0 0
      %687 = vmatpush1.bf16.msra.mxu0 %v673
      %688 = vmatprep.subr.bf16.mxu0 0
      %689 = vmatpush1.bf16.msra.mxu0 %v674
      %690 = vmatprep.subr.bf16.mxu0 0
      %691 = vmatpush1.bf16.msra.mxu0 0
      %692 = vmatprep.subr.bf16.mxu0 0
      %693 = vmatpush1.bf16.msra.mxu0 0
      %694 = vmatprep.subr.bf16.mxu0 0
      %695 = vmatpush1.bf16.msra.mxu0 0
      %696 = vmatprep.subr.bf16.mxu0 0
      %697 = vmatpush1.bf16.msra.mxu0 0
      %698 = vmatprep.subr.bf16.mxu0 0
      %699 = vmatpush1.bf16.msra.mxu0 0
      %700 = vmatprep.subr.bf16.mxu0 0
      %701 = vmatpush1.bf16.msra.mxu0 0
      %702 = vmatprep.subr.bf16.mxu0 0
      %703 = vmatpush1.bf16.msra.mxu0 0
      %704 = vmatprep.subr.bf16.mxu0 0
      %705 = vmatpush1.bf16.msra.mxu0 0
      %706 = vmatprep.subr.bf16.mxu0 0
      %707 = vmatpush1.bf16.msra.mxu0 0
      %708 = vmatprep.subr.bf16.mxu0 0
      %709 = vmatpush1.bf16.msra.mxu0 0
      %710 = vmatprep.subr.bf16.mxu0 0
      %711 = vmatpush1.bf16.msra.mxu0 0
      %712 = vmatprep.subr.bf16.mxu0 0
      %713 = vmatpush1.bf16.msra.mxu0 0
      %714 = vmatprep.mubr.bf16.mxu0 0
      %715 = vmatmul.mubr.bf16.gmra.mrb[0].mxu0 %v680
      %v716 = vpop.f32.mrb[0].mxu0
      %v717 = vadd.f32 %v650, %v716
      %v718 = vpop.f32.mrb[0].mxu0
      %v719 = vpop.f32.mrb[0].mxu0
      %v720 = vpop.f32.mrb[0].mxu0
      %721 = vdwg.mxu0
      %v722 = vld [vmem:[%s5 + $0x3] sm:$0x1]
      %v723 = vlaneseq
      %v724 = vshrl.u32 %v723, 7
      %v725 = vsub.s32 0, %v724
      %v726 = vrot.slane %v722, %v725
      %v727 = vadd.f32 %v717, %v726
      %v728 = vmax.f32 %v727, 0.0
      %v729 = vld [vmem:[%s5 + $0x4] sm:$0x1]
      %v730 = vlaneseq
      %v731 = vshrl.u32 %v730, 7
      %v732 = vsub.s32 0, %v731
      %v733 = vrot.slane %v729, %v732
      %v734 = vmul.f32 %v728, %v733
      %v735 = vld [vmem:[%s5 + $0x5] sm:$0x1]
      %v736 = vlaneseq
      %v737 = vshrl.u32 %v736, 7
      %v738 = vsub.s32 0, %v737
      %v739 = vrot.slane %v735, %v738
      %v740 = vadd.f32 %v734, %v739
      %v741 = vpack.c.bf16 %v740, %v740
      %s742 = scalar_lea.vmem %s4, 96
      %v743 = vld [vmem:[%s742] sm:$0xf]
      %v744 = vld [vmem:[%s742 + $0x4] sm:$0xf]
      %v745 = vld [vmem:[%s742 + $0x8] sm:$0xf]
      %v746 = vld [vmem:[%s742 + $0xc] sm:$0xf]
      %v747 = vld [vmem:[%s742 + $0x10] sm:$0xf]
      %v748 = vld [vmem:[%s742 + $0x14] sm:$0xf]
      %v749 = vld [vmem:[%s742 + $0x18] sm:$0xf]
      %v750 = vld [vmem:[%s742 + $0x1c] sm:$0xf]
      %v751 = vld [vmem:[%s5 + $0x6] sm:$0x1]
      %v752 = vlaneseq
      %v753 = vshrl.u32 %v752, 7
      %v754 = vsub.s32 0, %v753
      %v755 = vrot.slane %v751, %v754
      %v764 = vunpack.c.l.b16 %v743
      %v765 = vunpack.c.l.b16 %v744
      %v766 = vunpack.c.l.b16 %v745
      %v767 = vunpack.c.l.b16 %v746
      %v768 = vunpack.c.l.b16 %v747
      %v769 = vunpack.c.l.b16 %v748
      %v770 = vunpack.c.l.b16 %v749
      %v771 = vunpack.c.l.b16 %v750
      %v772 = vpack.c.b16 %v765, %v764
      %v773 = vpack.c.b16 %v767, %v766
      %v774 = vpack.c.b16 %v769, %v768
      %v775 = vpack.c.b16 %v771, %v770
      %v781 = vsel %vm524, %v741, 0
      %783 = vmatprep.subr.bf16.mxu0 0
      %784 = vmatpush1.bf16.msra.mxu0 %v772
      %785 = vmatprep.subr.bf16.mxu0 0
      %786 = vmatpush1.bf16.msra.mxu0 %v773
      %787 = vmatprep.subr.bf16.mxu0 0
      %788 = vmatpush1.bf16.msra.mxu0 %v774
      %789 = vmatprep.subr.bf16.mxu0 0
      %790 = vmatpush1.bf16.msra.mxu0 %v775
      %791 = vmatprep.subr.bf16.mxu0 0
      %792 = vmatpush1.bf16.msra.mxu0 0
      %793 = vmatprep.subr.bf16.mxu0 0
      %794 = vmatpush1.bf16.msra.mxu0 0
      %795 = vmatprep.subr.bf16.mxu0 0
      %796 = vmatpush1.bf16.msra.mxu0 0
      %797 = vmatprep.subr.bf16.mxu0 0
      %798 = vmatpush1.bf16.msra.mxu0 0
      %799 = vmatprep.subr.bf16.mxu0 0
      %800 = vmatpush1.bf16.msra.mxu0 0
      %801 = vmatprep.subr.bf16.mxu0 0
      %802 = vmatpush1.bf16.msra.mxu0 0
      %803 = vmatprep.subr.bf16.mxu0 0
      %804 = vmatpush1.bf16.msra.mxu0 0
      %805 = vmatprep.subr.bf16.mxu0 0
      %806 = vmatpush1.bf16.msra.mxu0 0
      %807 = vmatprep.subr.bf16.mxu0 0
      %808 = vmatpush1.bf16.msra.mxu0 0
      %809 = vmatprep.subr.bf16.mxu0 0
      %810 = vmatpush1.bf16.msra.mxu0 0
      %811 = vmatprep.subr.bf16.mxu0 0
      %812 = vmatpush1.bf16.msra.mxu0 0
      %813 = vmatprep.subr.bf16.mxu0 0
      %814 = vmatpush1.bf16.msra.mxu0 0
      %815 = vmatprep.mubr.bf16.mxu0 0
      %816 = vmatmul.mubr.bf16.gmra.mrb[0].mxu0 %v781
      %v817 = vpop.f32.mrb[0].mxu0
      %v818 = vadd.f32 %v755, %v817
      %v819 = vpop.f32.mrb[0].mxu0
      %v820 = vpop.f32.mrb[0].mxu0
      %v821 = vpop.f32.mrb[0].mxu0
      %822 = vdwg.mxu0
      %v823 = vmax.f32 %v818, 0.0
      %v824 = vld [vmem:[%s5 + $0x7] sm:$0x1]
      %v825 = vlaneseq
      %v826 = vshrl.u32 %v825, 7
      %v827 = vsub.s32 0, %v826
      %v828 = vrot.slane %v824, %v827
      %v829 = vmul.f32 %v823, %v828
      %v830 = vsel %vm524, %v829, 0.0
      %831 = vadd.xlane.f32.xlu0 %v830
      %v832 = vpop.xlane.xlu0 %831
      %vm833 = vcmask 7168
      %834 = vst.msk [vmem:[%s263] sm:$0xff] %vm833, %v832
      %p835 = scmp.lt.s32.totalorder %s17, 1
      %s836 = scalar_select %p835, %s17, 1
      %s837 = smul.addr %s836, 8
      %s838 = scalar_lea.vmem %s6, %s837
      // Predicated region
      $region45: #{tpu_custom_call.1} parent=43 // pred_check
        %p839 = pneg %p171
      $region46: #{tpu_custom_call.1} parent=43 // pred_check_branch
        %841 = sbr.rel (%p839) target = $region48
      $region47: #{tpu_custom_call.1} parent=43 // pred_region
        _
      $region48: #{tpu_custom_call.1} parent=43 // pred_fallthru
        _
    $region44: #{tpu_custom_call.1} parent=5 // pred_fallthru
      _
    %p842 = scmp.le.s32.totalorder 2, %s12
    // Predicated region
    $region49: #{tpu_custom_call.1} parent=5 // pred_check
      %p843 = pneg %p842
    $region50: #{tpu_custom_call.1} parent=5 // pred_check_branch
      %845 = sbr.rel (%p843) target = $region52
    $region51: #{tpu_custom_call.1} parent=5 // pred_region
      %s846 = ssub.s32 %s12, 2
      // Predicated region
      $region53: #{tpu_custom_call.1} parent=51 // pred_check
        %p847 = pneg %p177
      $region54: #{tpu_custom_call.1} parent=51 // pred_check_branch
        %849 = sbr.rel (%p847) target = $region56
      $region55: #{tpu_custom_call.1} parent=51 // pred_region
        %p850 = scmp.lt.s32.totalorder %s18, 1
        %s851 = scalar_select %p850, %s18, 1
        %s852 = smul.addr %s851, 8
        %s853 = scalar_lea.vmem %s6, %s852
      $region56: #{tpu_custom_call.1} parent=51 // pred_fallthru
        _
    $region52: #{tpu_custom_call.1} parent=5 // pred_fallthru
      _
  $region6: #{tpu_custom_call.1} parent=0 // loop_footer
    %s16 = sadd.s32 1, %s12
  $region7: #{tpu_custom_call.1} parent=0 // loop_footer_branch
    %11 = sbr.rel target = $region3
  $region8: #{tpu_custom_call.1} parent=0 // loop_exit
    _

</llo_original>
